<compile_context>
chip_gen: v5e
topology: v5e:2x2
jax: 0.10.0
libtpu: 0.0.40
codegen_flags: <defaults>
</compile_context>

<pallas_src>
import functools
import math

import jax
import jax.numpy as jnp
from jax.experimental import pallas as pl
from jax.experimental.pallas import tpu as pltpu


# ----------------------------- in-kernel helpers -----------------------------

def _sigmoid(v):
    # exp on the EUP + exact reciprocal (still off the VALU slots).
    return pl.reciprocal(1.0 + jnp.exp(-v), approx=False)


def _silu(v):
    return v * _sigmoid(v)


# ------------------------------- fused kernel --------------------------------

def _downc_kernel(xs_ref, w1_ref, b1_ref, w2_ref, b2_ref, w3_ref, b3_ref,
                  o_ref, y1_scr, *, ho, wo, ipb, c_p, c2h):
    """One image-group strip of the DownC block on the stride-2 phase layout.

    xs_ref : (1, C1, 4*strip) bf16   lane = phase*strip + n_local*P + oy*Wo + ox
    w1_ref : (c_p, C1)  bf16         cv1 1x1 weight, BN folded, channel-padded
    w2_ref : (c2h, 9*c_p) bf16       cv2 3x3 weight, tap-major columns, BN folded
    w3_ref : (c2h, C1)  bf16         cv3 1x1 weight, BN folded
    b*_ref : (*, 1) f32              folded BN biases
    o_ref  : (1, 2, c2h, strip) f32  branch-major, lane-dense output
    y1_scr : (c_p, 4*strip) f32      VMEM scratch for the cv1 output (all phases)
    """
    P = ho * wo                 # output pixels per image
    strip = ipb * P             # lanes per grid step (multiple of 128, whole images)

    xs = xs_ref[0]                                               # (C1, 4*strip) bf16

    # ---- cv1: 1x1 conv + BN + SiLU on all four phases at once ---------------
    y1 = jnp.dot(w1_ref[...], xs, preferred_element_type=jnp.float32) + b1_ref[...]
    y1_scr[...] = _silu(y1)                                      # (c_p, 4*strip) f32

    # ---- branch B: maxpool(2,2) == max of the four phases, then cv3 ---------
    mp = jnp.maximum(jnp.maximum(xs[:, 0 * strip:1 * strip], xs[:, 1 * strip:2 * strip]),
                     jnp.maximum(xs[:, 2 * strip:3 * strip], xs[:, 3 * strip:4 * strip]))
    y3 = _silu(jnp.dot(w3_ref[...], mp, preferred_element_type=jnp.float32)
               + b3_ref[...])                                    # (c2h, strip) f32

    # ---- branch A: 3x3 / stride-2 / pad-1 conv on y1, as ONE K=9*c_p matmul --
    # Tap (dy, dx) reads phase (py, px) of y1 shifted by 0/1 output rows/cols;
    # positions in the conv's zero padding are masked.  Masks depend only on the
    # lane index -> (1, strip) and broadcast.
    pix = jax.lax.broadcasted_iota(jnp.int32, (1, strip), 1)
    row_ok = (pix % P) >= wo        # not the first output row of its image
    col_ok = (pix % wo) != 0        # not the first output column
    both_ok = jnp.logical_and(row_ok, col_ok)

    taps = []
    for dy in range(3):
        py, rs = (0, 0) if dy == 1 else (1, 1 if dy == 0 else 0)
        for dx in range(3):
            px, cs = (0, 0) if dx == 1 else (1, 1 if dx == 0 else 0)
            p = 2 * py + px
            tap = y1_scr[:, p * strip:(p + 1) * strip]           # (c_p, strip) f32
            k = rs * wo + cs
            if k:
                # tap[:, f] <- tap[:, f - k]; wrapped / padded lanes are masked.
                tap = pltpu.roll(tap, k, axis=1)
                mask = both_ok if (rs and cs) else (row_ok if rs else col_ok)
                tap = jnp.where(mask, tap, 0.0)
            taps.append(tap)
    stacked = jnp.concatenate(taps, axis=0).astype(jnp.bfloat16)  # (9*c_p, strip)
    y2 = _silu(jnp.dot(w2_ref[...], stacked, preferred_element_type=jnp.float32)
               + b2_ref[...])                                    # (c2h, strip) f32

    # ---- channel concat realized by layout: cv2 branch first, then cv3 ------
    o_ref[0, 0] = y2.astype(o_ref.dtype)
    o_ref[0, 1] = y3.astype(o_ref.dtype)


# --------------------------------- wrapper -----------------------------------

def _bn_fold(gamma, beta, mean, var, eps=1e-5):
    scale = gamma * jax.lax.rsqrt(var + eps)
    return scale, beta - mean * scale


def downc_forward(x_nchw, params):
    """DownC forward.  x_nchw: (N, C1, H, W) f32 -> (N, C2, H//2, W//2) f32."""
    N, C1, H, W = x_nchw.shape
    assert H % 2 == 0 and W % 2 == 0, "DownC kernel assumes even H, W"
    Ho, Wo = H // 2, W // 2
    P = Ho * Wo

    # Images per grid step so the lane axis (strip) is a multiple of 128 and each
    # strip covers whole images (keeps the roll+mask zero-padding exact, no halo).
    ipb = 128 // math.gcd(P, 128)
    assert N % ipb == 0, "batch must be divisible by images-per-strip"
    n_groups = N // ipb
    strip = ipb * P

    (w1, bn1), (w2, bn2), (w3, bn3) = params["cv1"], params["cv2"], params["cv3"]
    s1, b1 = _bn_fold(*bn1)
    s2, b2 = _bn_fold(*bn2)
    s3, b3 = _bn_fold(*bn3)
    c_, c2h = w1.shape[0], w2.shape[0]
    c_p = -(-c_ // 8) * 8           # pad cv1 output channels to a sublane multiple

    # Fold BN scale into the conv weights (inference); bf16 MXU operands, f32 bias.
    w1f = jnp.zeros((c_p, C1), jnp.float32).at[:c_].set(w1[:, :, 0, 0] * s1[:, None])
    b1f = jnp.zeros((c_p, 1), jnp.float32).at[:c_].set(b1[:, None])
    w3f = w3[:, :, 0, 0] * s3[:, None]                           # (c2h, C1)
    w2t = (w2 * s2[:, None, None, None]).transpose(0, 2, 3, 1)   # (c2h, 3, 3, c_)
    w2f = jnp.zeros((c2h, 3, 3, c_p), jnp.float32).at[..., :c_].set(w2t)
    w2f = w2f.reshape(c2h, 9 * c_p)                              # tap-major columns

    # Space-to-depth: stride-2 phases, channel-first, image-group-major lanes.
    # TODO(synk): express this phase pick via BlockSpec/DMA at production sizes.
    xs = x_nchw.reshape(n_groups, ipb, C1, Ho, 2, Wo, 2)
    xs = xs.transpose(0, 2, 4, 6, 1, 3, 5).reshape(n_groups, C1, 4 * strip)
    xs = xs.astype(jnp.bfloat16)

    grid_spec = pltpu.PrefetchScalarGridSpec(
        num_scalar_prefetch=0,
        grid=(n_groups,),
        in_specs=[
            pl.BlockSpec((1, C1, 4 * strip), lambda g: (g, 0, 0)),   # xs strip
            pl.BlockSpec((c_p, C1), lambda g: (0, 0)),               # w1 (resident)
            pl.BlockSpec((c_p, 1), lambda g: (0, 0)),                # b1
            pl.BlockSpec((c2h, 9 * c_p), lambda g: (0, 0)),          # w2
            pl.BlockSpec((c2h, 1), lambda g: (0, 0)),                # b2
            pl.BlockSpec((c2h, C1), lambda g: (0, 0)),               # w3
            pl.BlockSpec((c2h, 1), lambda g: (0, 0)),                # b3
        ],
        out_specs=pl.BlockSpec((1, 2, c2h, strip), lambda g: (g, 0, 0, 0)),
        scratch_shapes=[pltpu.VMEM((c_p, 4 * strip), jnp.float32)],
    )

    out = pl.pallas_call(
        functools.partial(_downc_kernel, ho=Ho, wo=Wo, ipb=ipb, c_p=c_p, c2h=c2h),
        out_shape=jax.ShapeDtypeStruct((n_groups, 2, c2h, strip), jnp.float32),
        grid_spec=grid_spec,
        compiler_params=pltpu.CompilerParams(
            dimension_semantics=("parallel",),
            vmem_limit_bytes=32 * 1024 * 1024),
    )(xs, w1f.astype(jnp.bfloat16), b1f, w2f.astype(jnp.bfloat16), b2[:, None],
      w3f.astype(jnp.bfloat16), b3[:, None])

    # (group, branch, c2h, ipb*Ho*Wo) -> NCHW; the channel concat is pure layout.
    out = out.reshape(n_groups, 2, c2h, ipb, Ho, Wo)
    out = out.transpose(0, 3, 1, 2, 4, 5).reshape(N, 2 * c2h, Ho, Wo)
    return out


# --------------------------- parameters & reference --------------------------

def make_params(c1, c2, key):
    assert c2 % 2 == 0
    c_, c2h = int(c1), c2 // 2
    ks = jax.random.split(key, 6)

    def bn(k, c):
        kg, kb, km, kv = jax.random.split(k, 4)
        return (1.0 + 0.1 * jax.random.normal(kg, (c,), jnp.float32),
                0.1 * jax.random.normal(kb, (c,), jnp.float32),
                0.1 * jax.random.normal(km, (c,), jnp.float32),
                1.0 + 0.1 * jnp.abs(jax.random.normal(kv, (c,), jnp.float32)))

    return {
        "cv1": (0.4 * jax.random.normal(ks[0], (c_, c1, 1, 1), jnp.float32),
                bn(ks[1], c_)),
        "cv2": (0.2 * jax.random.normal(ks[2], (c2h, c_, 3, 3), jnp.float32),
                bn(ks[3], c2h)),
        "cv3": (0.4 * jax.random.normal(ks[4], (c2h, c1, 1, 1), jnp.float32),
                bn(ks[5], c2h)),
    }


def downc_reference(x, params):
    """Pure-JAX (XLA) reference of the same DownC forward, for verification."""
    def conv_bn_silu(h, w, bn, stride, pad):
        y = jax.lax.conv_general_dilated(
            h, w, window_strides=(stride, stride),
            padding=((pad, pad), (pad, pad)),
            dimension_numbers=("NCHW", "OIHW", "NCHW"),
            precision=jax.lax.Precision.HIGHEST)
        s, b = _bn_fold(*bn)
        y = y * s[None, :, None, None] + b[None, :, None, None]
        return y * jax.nn.sigmoid(y)

    (w1, bn1), (w2, bn2), (w3, bn3) = params["cv1"], params["cv2"], params["cv3"]
    y_a = conv_bn_silu(conv_bn_silu(x, w1, bn1, 1, 0), w2, bn2, 2, 1)
    mp = jax.lax.reduce_window(x, -jnp.inf, jax.lax.max,
                               (1, 1, 2, 2), (1, 1, 2, 2), "VALID")
    y_b = conv_bn_silu(mp, w3, bn3, 1, 0)
    return jnp.concatenate([y_a, y_b], axis=1)


# ----------------------------------- main -------------------------------------

if __name__ == "__main__":
    key = jax.random.PRNGKey(0)
    kx, kp = jax.random.split(key)
    N, C1, H, W = 2, 4, 16, 16
    C2 = 4

    x = jax.random.normal(kx, (N, C1, H, W), jnp.float32)
    params = make_params(C1, C2, kp)

    out = jax.jit(downc_forward)(x, params)
    jax.block_until_ready(out)

    assert out.shape == (N, C2, H // 2, W // 2), out.shape
    assert bool(jnp.all(jnp.isfinite(out)))

    ref = downc_reference(x, params)
    max_err = float(jnp.max(jnp.abs(out - ref)))
    # Tolerance covers the bf16 MXU operands (inputs/weights rounded to bf16);
    # structural errors (mis-shifted conv taps etc.) would be O(1).
    assert max_err < 5e-2, f"mismatch vs reference: {max_err}"

    print("KERNEL_OK")
</pallas_src>

<mosaic_0001>
module attributes {stable_mosaic.version = 11 : i64} {
  func.func @_downc_kernel(%arg0: i32, %arg1: memref<1x4x512xbf16, #tpu.memory_space<vmem>>, %arg2: memref<8x4xbf16, #tpu.memory_space<vmem>>, %arg3: memref<8x1xf32, #tpu.memory_space<vmem>>, %arg4: memref<2x72xbf16, #tpu.memory_space<vmem>>, %arg5: memref<2x1xf32, #tpu.memory_space<vmem>>, %arg6: memref<2x4xbf16, #tpu.memory_space<vmem>>, %arg7: memref<2x1xf32, #tpu.memory_space<vmem>>, %arg8: memref<1x2x2x128xf32, #tpu.memory_space<vmem>>, %arg9: memref<8x512xf32, #tpu.memory_space<vmem>>) attributes {dimension_semantics = [#tpu.dimension_semantics<parallel>], iteration_bounds = array<i64: 1>, scalar_prefetch = 0 : i64, scratch_operands = 1 : i64, tpu.core_type = #tpu.core_type<tc>, window_params = [{transform_indices = @transform_0, window_bounds = array<i64: 1, 4, 512>}, {pipeline_mode = #tpu.pipeline_mode<synchronous>, transform_indices = @transform_1, window_bounds = array<i64: 8, 4>}, {pipeline_mode = #tpu.pipeline_mode<synchronous>, transform_indices = @transform_2, window_bounds = array<i64: 8, 1>}, {pipeline_mode = #tpu.pipeline_mode<synchronous>, transform_indices = @transform_3, window_bounds = array<i64: 2, 72>}, {pipeline_mode = #tpu.pipeline_mode<synchronous>, transform_indices = @transform_4, window_bounds = array<i64: 2, 1>}, {pipeline_mode = #tpu.pipeline_mode<synchronous>, transform_indices = @transform_5, window_bounds = array<i64: 2, 4>}, {pipeline_mode = #tpu.pipeline_mode<synchronous>, transform_indices = @transform_6, window_bounds = array<i64: 2, 1>}, {transform_indices = @transform_7, window_bounds = array<i64: 1, 2, 2, 128>}]} {
    %c0 = arith.constant 0 : index
    %c0_0 = arith.constant 0 : index
    %c0_1 = arith.constant 0 : index
    %0 = vector.load %arg1[%c0, %c0_0, %c0_1] : memref<1x4x512xbf16, #tpu.memory_space<vmem>>, vector<1x4x512xbf16>
    %1 = vector.shape_cast %0 : vector<1x4x512xbf16> to vector<4x512xbf16>
    %c0_2 = arith.constant 0 : index
    %c0_3 = arith.constant 0 : index
    %2 = vector.load %arg2[%c0_2, %c0_3] : memref<8x4xbf16, #tpu.memory_space<vmem>>, vector<8x4xbf16>
    %cst = arith.constant dense<0.000000e+00> : vector<8x512xf32>
    %3 = tpu.matmul %2, %1, %cst {dimension_numbers = #tpu.dot_dimension_numbers<[1], [0], [0], [1], [0, 0, 1, 1], [], []>} : vector<8x4xbf16>, vector<4x512xbf16>, vector<8x512xf32> -> vector<8x512xf32>
    %c0_4 = arith.constant 0 : index
    %c0_5 = arith.constant 0 : index
    %4 = vector.load %arg3[%c0_4, %c0_5] : memref<8x1xf32, #tpu.memory_space<vmem>>, vector<8x1xf32>
    %5 = vector.broadcast %4 : vector<8x1xf32> to vector<8x512xf32>
    %6 = arith.addf %3, %5 : vector<8x512xf32>
    %cst_6 = arith.constant 0.000000e+00 : f32
    %7 = vector.broadcast %cst_6 : f32 to vector<8x512xf32>
    %8 = arith.subf %7, %6 : vector<8x512xf32>
    %9 = math.exp %8 : vector<8x512xf32>
    %cst_7 = arith.constant 1.000000e+00 : f32
    %10 = vector.broadcast %cst_7 : f32 to vector<8x512xf32>
    %11 = arith.addf %10, %9 : vector<8x512xf32>
    %12 = tpu.reciprocal %11 : vector<8x512xf32> -> vector<8x512xf32>
    %13 = arith.mulf %6, %12 : vector<8x512xf32>
    %c0_8 = arith.constant 0 : index
    %c0_9 = arith.constant 0 : index
    %14 = vector.load %arg9[%c0_8, %c0_9] : memref<8x512xf32, #tpu.memory_space<vmem>>, vector<8x512xf32>
    tpu.vector_store %arg9[%c0_8, %c0_9], %13 {strides = array<i32>} : memref<8x512xf32, #tpu.memory_space<vmem>>, vector<8x512xf32>,
    %15 = vector.extract_strided_slice %1 {offsets = [0, 0], sizes = [4, 128], strides = [1, 1]} : vector<4x512xbf16> to vector<4x128xbf16>
    %16 = vector.extract_strided_slice %1 {offsets = [0, 128], sizes = [4, 128], strides = [1, 1]} : vector<4x512xbf16> to vector<4x128xbf16>
    %17 = arith.maximumf %15, %16 : vector<4x128xbf16>
    %18 = vector.extract_strided_slice %1 {offsets = [0, 256], sizes = [4, 128], strides = [1, 1]} : vector<4x512xbf16> to vector<4x128xbf16>
    %19 = vector.extract_strided_slice %1 {offsets = [0, 384], sizes = [4, 128], strides = [1, 1]} : vector<4x512xbf16> to vector<4x128xbf16>
    %20 = arith.maximumf %18, %19 : vector<4x128xbf16>
    %21 = arith.maximumf %17, %20 : vector<4x128xbf16>
    %c0_10 = arith.constant 0 : index
    %c0_11 = arith.constant 0 : index
    %22 = vector.load %arg6[%c0_10, %c0_11] : memref<2x4xbf16, #tpu.memory_space<vmem>>, vector<2x4xbf16>
    %cst_12 = arith.constant dense<0.000000e+00> : vector<2x128xf32>
    %23 = tpu.matmul %22, %21, %cst_12 {dimension_numbers = #tpu.dot_dimension_numbers<[1], [0], [0], [1], [0, 0, 1, 1], [], []>} : vector<2x4xbf16>, vector<4x128xbf16>, vector<2x128xf32> -> vector<2x128xf32>
    %c0_13 = arith.constant 0 : index
    %c0_14 = arith.constant 0 : index
    %24 = vector.load %arg7[%c0_13, %c0_14] : memref<2x1xf32, #tpu.memory_space<vmem>>, vector<2x1xf32>
    %25 = vector.broadcast %24 : vector<2x1xf32> to vector<2x128xf32>
    %26 = arith.addf %23, %25 : vector<2x128xf32>
    %cst_15 = arith.constant 0.000000e+00 : f32
    %27 = vector.broadcast %cst_15 : f32 to vector<2x128xf32>
    %28 = arith.subf %27, %26 : vector<2x128xf32>
    %29 = math.exp %28 : vector<2x128xf32>
    %cst_16 = arith.constant 1.000000e+00 : f32
    %30 = vector.broadcast %cst_16 : f32 to vector<2x128xf32>
    %31 = arith.addf %30, %29 : vector<2x128xf32>
    %32 = tpu.reciprocal %31 : vector<2x128xf32> -> vector<2x128xf32>
    %33 = arith.mulf %26, %32 : vector<2x128xf32>
    %34 = tpu.iota {dimensions = array<i32: 1>} : vector<1x128xi32>
    %c64_i32 = arith.constant 64 : i32
    %c0_i32 = arith.constant 0 : i32
    %35 = arith.cmpi eq, %c64_i32, %c0_i32 : i32
    %c1_i32 = arith.constant 1 : i32
    %36 = arith.select %35, %c1_i32, %c64_i32 : i32
    %37 = vector.broadcast %36 : i32 to vector<1x128xi32>
    %38 = arith.remsi %34, %37 : vector<1x128xi32>
    %c0_i32_17 = arith.constant 0 : i32
    %39 = vector.broadcast %c0_i32_17 : i32 to vector<1x128xi32>
    %40 = arith.cmpi ne, %38, %39 : vector<1x128xi32>
    %c0_i32_18 = arith.constant 0 : i32
    %41 = vector.broadcast %c0_i32_18 : i32 to vector<1x128xi32>
    %42 = arith.cmpi slt, %38, %41 : vector<1x128xi32>
    %c0_i32_19 = arith.constant 0 : i32
    %43 = arith.cmpi slt, %36, %c0_i32_19 : i32
    %44 = vector.broadcast %43 : i1 to vector<1x128xi1>
    %45 = vector.broadcast %44 : vector<1x128xi1> to vector<1x128xi1>
    %46 = arith.xori %42, %45 : vector<1x128xi1>
    %47 = arith.andi %46, %40 : vector<1x128xi1>
    %48 = vector.broadcast %36 : i32 to vector<1x128xi32>
    %49 = arith.addi %38, %48 : vector<1x128xi32>
    %50 = arith.select %47, %49, %38 : vector<1x128xi1>, vector<1x128xi32>
    %c8_i32 = arith.constant 8 : i32
    %51 = vector.broadcast %c8_i32 : i32 to vector<1x128xi32>
    %52 = arith.cmpi sge, %50, %51 : vector<1x128xi32>
    %c8_i32_20 = arith.constant 8 : i32
    %c0_i32_21 = arith.constant 0 : i32
    %53 = arith.cmpi eq, %c8_i32_20, %c0_i32_21 : i32
    %c1_i32_22 = arith.constant 1 : i32
    %54 = arith.select %53, %c1_i32_22, %c8_i32_20 : i32
    %55 = vector.broadcast %54 : i32 to vector<1x128xi32>
    %56 = arith.remsi %34, %55 : vector<1x128xi32>
    %c0_i32_23 = arith.constant 0 : i32
    %57 = vector.broadcast %c0_i32_23 : i32 to vector<1x128xi32>
    %58 = arith.cmpi ne, %56, %57 : vector<1x128xi32>
    %c0_i32_24 = arith.constant 0 : i32
    %59 = vector.broadcast %c0_i32_24 : i32 to vector<1x128xi32>
    %60 = arith.cmpi slt, %56, %59 : vector<1x128xi32>
    %c0_i32_25 = arith.constant 0 : i32
    %61 = arith.cmpi slt, %54, %c0_i32_25 : i32
    %62 = vector.broadcast %61 : i1 to vector<1x128xi1>
    %63 = vector.broadcast %62 : vector<1x128xi1> to vector<1x128xi1>
    %64 = arith.xori %60, %63 : vector<1x128xi1>
    %65 = arith.andi %64, %58 : vector<1x128xi1>
    %66 = vector.broadcast %54 : i32 to vector<1x128xi32>
    %67 = arith.addi %56, %66 : vector<1x128xi32>
    %68 = arith.select %65, %67, %56 : vector<1x128xi1>, vector<1x128xi32>
    %c0_i32_26 = arith.constant 0 : i32
    %69 = vector.broadcast %c0_i32_26 : i32 to vector<1x128xi32>
    %70 = arith.cmpi ne, %68, %69 : vector<1x128xi32>
    %71 = arith.andi %52, %70 : vector<1x128xi1>
    %c0_27 = arith.constant 0 : index
    %c384 = arith.constant 384 : index
    %72 = vector.load %arg9[%c0_27, %c384] : memref<8x512xf32, #tpu.memory_space<vmem>>, vector<8x128xf32>
    %c9_i32 = arith.constant 9 : i32
    %73 = tpu.dynamic_rotate %72 by %c9_i32 dim 1 : vector<8x128xf32>, i32 -> vector<8x128xf32>
    %cst_28 = arith.constant 0.000000e+00 : f32
    %74 = vector.shape_cast %71 : vector<1x128xi1> to vector<1x128xi1>
    %75 = vector.broadcast %74 : vector<1x128xi1> to vector<8x128xi1>
    %76 = vector.broadcast %cst_28 : f32 to vector<8x128xf32>
    %77 = arith.select %75, %73, %76 : vector<8x128xi1>, vector<8x128xf32>
    %c0_29 = arith.constant 0 : index
    %c256 = arith.constant 256 : index
    %78 = vector.load %arg9[%c0_29, %c256] : memref<8x512xf32, #tpu.memory_space<vmem>>, vector<8x128xf32>
    %c8_i32_30 = arith.constant 8 : i32
    %79 = tpu.dynamic_rotate %78 by %c8_i32_30 dim 1 : vector<8x128xf32>, i32 -> vector<8x128xf32>
    %cst_31 = arith.constant 0.000000e+00 : f32
    %80 = vector.shape_cast %52 : vector<1x128xi1> to vector<1x128xi1>
    %81 = vector.broadcast %80 : vector<1x128xi1> to vector<8x128xi1>
    %82 = vector.broadcast %cst_31 : f32 to vector<8x128xf32>
    %83 = arith.select %81, %79, %82 : vector<8x128xi1>, vector<8x128xf32>
    %c0_32 = arith.constant 0 : index
    %c384_33 = arith.constant 384 : index
    %84 = vector.load %arg9[%c0_32, %c384_33] : memref<8x512xf32, #tpu.memory_space<vmem>>, vector<8x128xf32>
    %c8_i32_34 = arith.constant 8 : i32
    %85 = tpu.dynamic_rotate %84 by %c8_i32_34 dim 1 : vector<8x128xf32>, i32 -> vector<8x128xf32>
    %cst_35 = arith.constant 0.000000e+00 : f32
    %86 = vector.shape_cast %52 : vector<1x128xi1> to vector<1x128xi1>
    %87 = vector.broadcast %86 : vector<1x128xi1> to vector<8x128xi1>
    %88 = vector.broadcast %cst_35 : f32 to vector<8x128xf32>
    %89 = arith.select %87, %85, %88 : vector<8x128xi1>, vector<8x128xf32>
    %c0_36 = arith.constant 0 : index
    %c128 = arith.constant 128 : index
    %90 = vector.load %arg9[%c0_36, %c128] : memref<8x512xf32, #tpu.memory_space<vmem>>, vector<8x128xf32>
    %c1_i32_37 = arith.constant 1 : i32
    %91 = tpu.dynamic_rotate %90 by %c1_i32_37 dim 1 : vector<8x128xf32>, i32 -> vector<8x128xf32>
    %cst_38 = arith.constant 0.000000e+00 : f32
    %92 = vector.shape_cast %70 : vector<1x128xi1> to vector<1x128xi1>
    %93 = vector.broadcast %92 : vector<1x128xi1> to vector<8x128xi1>
    %94 = vector.broadcast %cst_38 : f32 to vector<8x128xf32>
    %95 = arith.select %93, %91, %94 : vector<8x128xi1>, vector<8x128xf32>
    %c0_39 = arith.constant 0 : index
    %c0_40 = arith.constant 0 : index
    %96 = vector.load %arg9[%c0_39, %c0_40] : memref<8x512xf32, #tpu.memory_space<vmem>>, vector<8x128xf32>
    %c0_41 = arith.constant 0 : index
    %c128_42 = arith.constant 128 : index
    %97 = vector.load %arg9[%c0_41, %c128_42] : memref<8x512xf32, #tpu.memory_space<vmem>>, vector<8x128xf32>
    %c0_43 = arith.constant 0 : index
    %c384_44 = arith.constant 384 : index
    %98 = vector.load %arg9[%c0_43, %c384_44] : memref<8x512xf32, #tpu.memory_space<vmem>>, vector<8x128xf32>
    %c1_i32_45 = arith.constant 1 : i32
    %99 = tpu.dynamic_rotate %98 by %c1_i32_45 dim 1 : vector<8x128xf32>, i32 -> vector<8x128xf32>
    %cst_46 = arith.constant 0.000000e+00 : f32
    %100 = vector.shape_cast %70 : vector<1x128xi1> to vector<1x128xi1>
    %101 = vector.broadcast %100 : vector<1x128xi1> to vector<8x128xi1>
    %102 = vector.broadcast %cst_46 : f32 to vector<8x128xf32>
    %103 = arith.select %101, %99, %102 : vector<8x128xi1>, vector<8x128xf32>
    %c0_47 = arith.constant 0 : index
    %c256_48 = arith.constant 256 : index
    %104 = vector.load %arg9[%c0_47, %c256_48] : memref<8x512xf32, #tpu.memory_space<vmem>>, vector<8x128xf32>
    %c0_49 = arith.constant 0 : index
    %c384_50 = arith.constant 384 : index
    %105 = vector.load %arg9[%c0_49, %c384_50] : memref<8x512xf32, #tpu.memory_space<vmem>>, vector<8x128xf32>
    %106 = tpu.concatenate %77, %83, %89, %95, %96, %97, %103, %104, %105 in 0 : vector<8x128xf32>, vector<8x128xf32>, vector<8x128xf32>, vector<8x128xf32>, vector<8x128xf32>, vector<8x128xf32>, vector<8x128xf32>, vector<8x128xf32>, vector<8x128xf32> -> vector<72x128xf32>
    %107 = arith.truncf %106 : vector<72x128xf32> to vector<72x128xbf16>
    %c0_51 = arith.constant 0 : index
    %c0_52 = arith.constant 0 : index
    %108 = vector.load %arg4[%c0_51, %c0_52] : memref<2x72xbf16, #tpu.memory_space<vmem>>, vector<2x72xbf16>
    %cst_53 = arith.constant dense<0.000000e+00> : vector<2x128xf32>
    %109 = tpu.matmul %108, %107, %cst_53 {dimension_numbers = #tpu.dot_dimension_numbers<[1], [0], [0], [1], [0, 0, 1, 1], [], []>} : vector<2x72xbf16>, vector<72x128xbf16>, vector<2x128xf32> -> vector<2x128xf32>
    %c0_54 = arith.constant 0 : index
    %c0_55 = arith.constant 0 : index
    %110 = vector.load %arg5[%c0_54, %c0_55] : memref<2x1xf32, #tpu.memory_space<vmem>>, vector<2x1xf32>
    %111 = vector.broadcast %110 : vector<2x1xf32> to vector<2x128xf32>
    %112 = arith.addf %109, %111 : vector<2x128xf32>
    %cst_56 = arith.constant 0.000000e+00 : f32
    %113 = vector.broadcast %cst_56 : f32 to vector<2x128xf32>
    %114 = arith.subf %113, %112 : vector<2x128xf32>
    %115 = math.exp %114 : vector<2x128xf32>
    %cst_57 = arith.constant 1.000000e+00 : f32
    %116 = vector.broadcast %cst_57 : f32 to vector<2x128xf32>
    %117 = arith.addf %116, %115 : vector<2x128xf32>
    %118 = tpu.reciprocal %117 : vector<2x128xf32> -> vector<2x128xf32>
    %119 = arith.mulf %112, %118 : vector<2x128xf32>
    %c0_58 = arith.constant 0 : index
    %c0_59 = arith.constant 0 : index
    %c0_60 = arith.constant 0 : index
    %c0_61 = arith.constant 0 : index
    %120 = vector.load %arg8[%c0_58, %c0_59, %c0_60, %c0_61] : memref<1x2x2x128xf32, #tpu.memory_space<vmem>>, vector<1x1x2x128xf32>
    %121 = vector.shape_cast %120 : vector<1x1x2x128xf32> to vector<2x128xf32>
    %122 = vector.shape_cast %119 : vector<2x128xf32> to vector<1x1x2x128xf32>
    tpu.vector_store %arg8[%c0_58, %c0_59, %c0_60, %c0_61], %122 {strides = array<i32>} : memref<1x2x2x128xf32, #tpu.memory_space<vmem>>, vector<1x1x2x128xf32>,
    %c0_62 = arith.constant 0 : index
    %c1 = arith.constant 1 : index
    %c0_63 = arith.constant 0 : index
    %c0_64 = arith.constant 0 : index
    %123 = vector.load %arg8[%c0_62, %c1, %c0_63, %c0_64] : memref<1x2x2x128xf32, #tpu.memory_space<vmem>>, vector<1x1x2x128xf32>
    %124 = vector.shape_cast %123 : vector<1x1x2x128xf32> to vector<2x128xf32>
    %125 = vector.shape_cast %33 : vector<2x128xf32> to vector<1x1x2x128xf32>
    tpu.vector_store %arg8[%c0_62, %c1, %c0_63, %c0_64], %125 {strides = array<i32>} : memref<1x2x2x128xf32, #tpu.memory_space<vmem>>, vector<1x1x2x128xf32>,
    return
  }
  func.func @transform_0(%arg0: i32) -> (i32, i32, i32) {
    %c0_i32 = arith.constant 0 : i32
    %c0_i32_0 = arith.constant 0 : i32
    %c0_i32_1 = arith.constant 0 : i32
    return %arg0, %c0_i32, %c0_i32_0 : i32, i32, i32
  }
  func.func @transform_1(%arg0: i32) -> (i32, i32) {
    %c0_i32 = arith.constant 0 : i32
    %c0_i32_0 = arith.constant 0 : i32
    %c0_i32_1 = arith.constant 0 : i32
    return %c0_i32, %c0_i32_0 : i32, i32
  }
  func.func @transform_2(%arg0: i32) -> (i32, i32) {
    %c0_i32 = arith.constant 0 : i32
    %c0_i32_0 = arith.constant 0 : i32
    %c0_i32_1 = arith.constant 0 : i32
    return %c0_i32, %c0_i32_0 : i32, i32
  }
  func.func @transform_3(%arg0: i32) -> (i32, i32) {
    %c0_i32 = arith.constant 0 : i32
    %c0_i32_0 = arith.constant 0 : i32
    %c0_i32_1 = arith.constant 0 : i32
    return %c0_i32, %c0_i32_0 : i32, i32
  }
  func.func @transform_4(%arg0: i32) -> (i32, i32) {
    %c0_i32 = arith.constant 0 : i32
    %c0_i32_0 = arith.constant 0 : i32
    %c0_i32_1 = arith.constant 0 : i32
    return %c0_i32, %c0_i32_0 : i32, i32
  }
  func.func @transform_5(%arg0: i32) -> (i32, i32) {
    %c0_i32 = arith.constant 0 : i32
    %c0_i32_0 = arith.constant 0 : i32
    %c0_i32_1 = arith.constant 0 : i32
    return %c0_i32, %c0_i32_0 : i32, i32
  }
  func.func @transform_6(%arg0: i32) -> (i32, i32) {
    %c0_i32 = arith.constant 0 : i32
    %c0_i32_0 = arith.constant 0 : i32
    %c0_i32_1 = arith.constant 0 : i32
    return %c0_i32, %c0_i32_0 : i32, i32
  }
  func.func @transform_7(%arg0: i32) -> (i32, i32, i32, i32) {
    %c0_i32 = arith.constant 0 : i32
    %c0_i32_0 = arith.constant 0 : i32
    %c0_i32_1 = arith.constant 0 : i32
    %c0_i32_2 = arith.constant 0 : i32
    return %arg0, %c0_i32, %c0_i32_0, %c0_i32_1 : i32, i32, i32, i32
  }
}

</mosaic_0001>

<llo_original>
// kernel: downc_forward.1
$region0: #{downc_forward.1}
  #allocation0 [shape = 'u32[]', space=smem, size = 0x4, offset = 0x4, fixed_abs, tag = 'smem constant byte address 0x4 - core index']
  #allocation1 [shape = 'u32[72,128]{1,0:T(1,128)}', space=vmem, size = 0x9000, scoped, tag = 'internal scratch']
  #allocation2 [shape = 'f32[8,512]{1,0:T(8,128)}', space=vmem, size = 0x4000, scoped, tag = 'scratch operand']
  %s0 = inlined_call_operand.vmem [shape: bf16[1,4,512], index: 0, kind: input, shape index: {}]
  %s1 = inlined_call_operand.vmem [shape: bf16[8,4], index: 1, kind: input, shape index: {}]
  %s2 = inlined_call_operand.vmem [shape: f32[8,1], index: 2, kind: input, shape index: {}]
  %s3 = inlined_call_operand.vmem [shape: bf16[2,72], index: 3, kind: input, shape index: {}]
  %s4 = inlined_call_operand.vmem [shape: f32[2,1], index: 4, kind: input, shape index: {}]
  %s5 = inlined_call_operand.vmem [shape: bf16[2,4], index: 5, kind: input, shape index: {}]
  %s6 = inlined_call_operand.vmem [shape: f32[2,1], index: 6, kind: input, shape index: {}]
  %s7 = inlined_call_operand.vmem [shape: f32[1,2,2,128], index: 7, kind: output, shape index: {}]
  %s8 = sld [smem:[#allocation0]]
  $region38: #{downc_forward.1} parent=0
    _
  %s10 = ssub.s32 1, %s8
  %s11 = scalar_select 0, %s10, %s8
  // Predicated region
  $region2: #{downc_forward.1} parent=0 // pred_check
    _
  $region3: #{downc_forward.1} parent=0 // pred_check_branch
    %13 = sbr.rel (0) target = $region5
  $region4: #{downc_forward.1} parent=0 // pred_region
    _
  $region5: #{downc_forward.1} parent=0 // pred_fallthru
    _
  // Predicated region
  $region6: #{downc_forward.1} parent=0 // pred_check
    _
  $region7: #{downc_forward.1} parent=0 // pred_check_branch
    %15 = sbr.rel (0) target = $region9
  $region8: #{downc_forward.1} parent=0 // pred_region
    _
  $region9: #{downc_forward.1} parent=0 // pred_fallthru
    _
  // Predicated region
  $region10: #{downc_forward.1} parent=0 // pred_check
    _
  $region11: #{downc_forward.1} parent=0 // pred_check_branch
    %17 = sbr.rel (0) target = $region13
  $region12: #{downc_forward.1} parent=0 // pred_region
    _
  $region13: #{downc_forward.1} parent=0 // pred_fallthru
    _
  // Predicated region
  $region14: #{downc_forward.1} parent=0 // pred_check
    _
  $region15: #{downc_forward.1} parent=0 // pred_check_branch
    %19 = sbr.rel (0) target = $region17
  $region16: #{downc_forward.1} parent=0 // pred_region
    _
  $region17: #{downc_forward.1} parent=0 // pred_fallthru
    _
  // Predicated region
  $region18: #{downc_forward.1} parent=0 // pred_check
    _
  $region19: #{downc_forward.1} parent=0 // pred_check_branch
    %21 = sbr.rel (0) target = $region21
  $region20: #{downc_forward.1} parent=0 // pred_region
    _
  $region21: #{downc_forward.1} parent=0 // pred_fallthru
    _
  // Predicated region
  $region22: #{downc_forward.1} parent=0 // pred_check
    _
  $region23: #{downc_forward.1} parent=0 // pred_check_branch
    %23 = sbr.rel (0) target = $region25
  $region24: #{downc_forward.1} parent=0 // pred_region
    _
  $region25: #{downc_forward.1} parent=0 // pred_fallthru
    _
  // Predicated region
  $region26: #{downc_forward.1} parent=0 // pred_check
    _
  $region27: #{downc_forward.1} parent=0 // pred_check_branch
    %25 = sbr.rel (0) target = $region29
  $region28: #{downc_forward.1} parent=0 // pred_region
    _
  $region29: #{downc_forward.1} parent=0 // pred_fallthru
    _
  %v27 = vld [vmem:[%s0] sm:$0xff]
  %v28 = vld [vmem:[%s1] sm:$0xf]
  %v29 = vld [vmem:[%s2] sm:$0xff]
  %31 = vset.pattern.permute.xlu0 0
  %32 = vperm.xlu0 %31, %v29
  %v33 = vpop.permute.xlu0 %32
  %36 = vst [vmem:[#allocation1] ss:$4 sm:$0xff] %v27
  %v37 = vld.sshfl [vmem:[#allocation1] sm:$0xff pattern:$0x73625140]
  %v38 = vld.sshfl [vmem:[#allocation1 + $0x8] sm:$0xff pattern:$0x73625140]
  %v39 = vld.sshfl [vmem:[#allocation1 + $0x10] sm:$0xff pattern:$0x73625140]
  %v40 = vld.sshfl [vmem:[#allocation1 + $0x18] sm:$0xff pattern:$0x73625140]
  %vm41 = vcmask 31744
  %v43 = vsel %vm41, %v28, 0
  %vm45 = vcmask 1041408
  %v46 = vsel %vm45, %v37, 0
  %v48 = vsel %vm45, %v38, 0
  %v50 = vsel %vm45, %v39, 0
  %v52 = vsel %vm45, %v40, 0
  %54 = vmatpush.bf16.msra.mxu0 0
  %55 = vmatpush.bf16.msra.mxu0 0
  %56 = vmatpush.bf16.msra.mxu0 0
  %57 = vmatpush.bf16.msra.mxu0 0
  %58 = vmatpush.bf16.msra.mxu0 0
  %59 = vmatpush.bf16.msra.mxu0 0
  %60 = vmatpush.bf16.msra.mxu0 0
  %61 = vmatpush.bf16.msra.mxu0 %v46
  %62 = vmatmul.bf16.gmra.mxu0 %v43
  %v63 = vpop.f32.mrf.mxu0
  %v64 = vadd.f32 %v33, %v63
  %v65 = vpop.f32.mrf.mxu0
  %66 = vdwg.mxu0
  %67 = vmatpush.bf16.msra.mxu0 0
  %68 = vmatpush.bf16.msra.mxu0 0
  %69 = vmatpush.bf16.msra.mxu0 0
  %70 = vmatpush.bf16.msra.mxu0 0
  %71 = vmatpush.bf16.msra.mxu0 0
  %72 = vmatpush.bf16.msra.mxu0 0
  %73 = vmatpush.bf16.msra.mxu0 0
  %74 = vmatpush.bf16.msra.mxu0 %v48
  %75 = vmatmul.bf16.gmra.mxu0 %v43
  %v76 = vpop.f32.mrf.mxu0
  %v77 = vadd.f32 %v33, %v76
  %v78 = vpop.f32.mrf.mxu0
  %79 = vdwg.mxu0
  %80 = vmatpush.bf16.msra.mxu0 0
  %81 = vmatpush.bf16.msra.mxu0 0
  %82 = vmatpush.bf16.msra.mxu0 0
  %83 = vmatpush.bf16.msra.mxu0 0
  %84 = vmatpush.bf16.msra.mxu0 0
  %85 = vmatpush.bf16.msra.mxu0 0
  %86 = vmatpush.bf16.msra.mxu0 0
  %87 = vmatpush.bf16.msra.mxu0 %v50
  %88 = vmatmul.bf16.gmra.mxu0 %v43
  %v89 = vpop.f32.mrf.mxu0
  %v90 = vadd.f32 %v33, %v89
  %v91 = vpop.f32.mrf.mxu0
  %92 = vdwg.mxu0
  %93 = vmatpush.bf16.msra.mxu0 0
  %94 = vmatpush.bf16.msra.mxu0 0
  %95 = vmatpush.bf16.msra.mxu0 0
  %96 = vmatpush.bf16.msra.mxu0 0
  %97 = vmatpush.bf16.msra.mxu0 0
  %98 = vmatpush.bf16.msra.mxu0 0
  %99 = vmatpush.bf16.msra.mxu0 0
  %100 = vmatpush.bf16.msra.mxu0 %v52
  %101 = vmatmul.bf16.gmra.mxu0 %v43
  %v102 = vpop.f32.mrf.mxu0
  %v103 = vadd.f32 %v33, %v102
  %v104 = vpop.f32.mrf.mxu0
  %105 = vdwg.mxu0
  %v106 = vsub.f32 0.0, %v64
  %v107 = vsub.f32 0.0, %v77
  %v108 = vsub.f32 0.0, %v90
  %v109 = vsub.f32 0.0, %v103
  %v110 = vmul.f32 %v106, 1.442695
  %v111 = vpow.pop %v110
  %v112 = vmul.f32 %v107, 1.442695
  %v113 = vpow.pop %v112
  %v114 = vmul.f32 %v108, 1.442695
  %v115 = vpow.pop %v114
  %v116 = vmul.f32 %v109, 1.442695
  %v117 = vpow.pop %v116
  %v118 = vadd.f32 %v111, 1.0
  %v119 = vadd.f32 %v113, 1.0
  %v120 = vadd.f32 %v115, 1.0
  %v121 = vadd.f32 %v117, 1.0
  %v122 = vrcp.pop %v118
  %v123 = vmul.f32 %v118, %v122
  %v124 = vsub.f32 1.0, %v123
  %v125 = vmul.f32 %v122, %v124
  %v126 = vadd.f32 %v122, %v125
  %vm127 = vweird.f32 %v118
  %vm128 = vweird.f32 %v122
  %vm129 = vmor %vm127, %vm128
  %v130 = vsel %vm129, %v122, %v126
  %v131 = vand.u32 2147483647, %v118
  %vm132 = vcmp.eq.f32.partialorder %v131, 8.507059e+37
  %v133 = vand.u32 %v118, 2147483648
  %v134 = vor.u32 1.1754944e-38, %v133
  %v135 = vsel %vm132, %v134, %v130
  %v136 = vrcp.pop %v119
  %v137 = vmul.f32 %v119, %v136
  %v138 = vsub.f32 1.0, %v137
  %v139 = vmul.f32 %v136, %v138
  %v140 = vadd.f32 %v136, %v139
  %vm141 = vweird.f32 %v119
  %vm142 = vweird.f32 %v136
  %vm143 = vmor %vm141, %vm142
  %v144 = vsel %vm143, %v136, %v140
  %v145 = vand.u32 2147483647, %v119
  %vm146 = vcmp.eq.f32.partialorder %v145, 8.507059e+37
  %v147 = vand.u32 %v119, 2147483648
  %v148 = vor.u32 1.1754944e-38, %v147
  %v149 = vsel %vm146, %v148, %v144
  %v150 = vrcp.pop %v120
  %v151 = vmul.f32 %v120, %v150
  %v152 = vsub.f32 1.0, %v151
  %v153 = vmul.f32 %v150, %v152
  %v154 = vadd.f32 %v150, %v153
  %vm155 = vweird.f32 %v120
  %vm156 = vweird.f32 %v150
  %vm157 = vmor %vm155, %vm156
  %v158 = vsel %vm157, %v150, %v154
  %v159 = vand.u32 2147483647, %v120
  %vm160 = vcmp.eq.f32.partialorder %v159, 8.507059e+37
  %v161 = vand.u32 %v120, 2147483648
  %v162 = vor.u32 1.1754944e-38, %v161
  %v163 = vsel %vm160, %v162, %v158
  %v164 = vrcp.pop %v121
  %v165 = vmul.f32 %v121, %v164
  %v166 = vsub.f32 1.0, %v165
  %v167 = vmul.f32 %v164, %v166
  %v168 = vadd.f32 %v164, %v167
  %vm169 = vweird.f32 %v121
  %vm170 = vweird.f32 %v164
  %vm171 = vmor %vm169, %vm170
  %v172 = vsel %vm171, %v164, %v168
  %v173 = vand.u32 2147483647, %v121
  %vm174 = vcmp.eq.f32.partialorder %v173, 8.507059e+37
  %v175 = vand.u32 %v121, 2147483648
  %v176 = vor.u32 1.1754944e-38, %v175
  %v177 = vsel %vm174, %v176, %v172
  %v178 = vmul.f32 %v64, %v135
  %v179 = vmul.f32 %v77, %v149
  %v180 = vmul.f32 %v90, %v163
  %v181 = vmul.f32 %v103, %v177
  %182 = vst [vmem:[#allocation2] sm:$0xff] %v178
  %183 = vst [vmem:[#allocation2 + $0x8] sm:$0xff] %v179
  %184 = vst [vmem:[#allocation2 + $0x10] sm:$0xff] %v180
  %185 = vst [vmem:[#allocation2 + $0x18] sm:$0xff] %v181
  %v186 = vunpack.c.l.bf16 %v27
  %v188 = vrot.slane %v27, 2
  %v190 = vunpack.c.l.bf16 %v188
  %v191 = vmax.f32 %v186, %v190
  %v192 = vpack.c.bf16 %v191, %v191
  %v193 = vrot.slane %v27, 4
  %v195 = vunpack.c.l.bf16 %v193
  %v196 = vrot.slane %v27, 6
  %v198 = vunpack.c.l.bf16 %v196
  %v199 = vmax.f32 %v195, %v198
  %v200 = vpack.c.bf16 %v199, %v199
  %v201 = vunpack.c.l.bf16 %v192
  %v202 = vunpack.c.l.bf16 %v200
  %v203 = vmax.f32 %v201, %v202
  %v204 = vpack.c.bf16 %v203, %v203
  %v205 = vld [vmem:[%s5] sm:$0x1]
  %v206 = vld [vmem:[%s6] sm:$0x3]
  %208 = vset.pattern.permute.xlu0 0
  %209 = vperm.xlu0 %208, %v206
  %v210 = vpop.permute.xlu0 %209
  %v213 = vsel %vm41, %v205, 0
  %v216 = vsel %vm45, %v204, 0
  %218 = vmatpush.bf16.msra.mxu0 0
  %219 = vmatpush.bf16.msra.mxu0 0
  %220 = vmatpush.bf16.msra.mxu0 0
  %221 = vmatpush.bf16.msra.mxu0 0
  %222 = vmatpush.bf16.msra.mxu0 0
  %223 = vmatpush.bf16.msra.mxu0 0
  %224 = vmatpush.bf16.msra.mxu0 0
  %225 = vmatpush.bf16.msra.mxu0 %v216
  %226 = vmatmul.bf16.gmra.mxu0 %v213
  %v227 = vpop.f32.mrf.mxu0
  %v228 = vadd.f32 %v210, %v227
  %v229 = vpop.f32.mrf.mxu0
  %230 = vdwg.mxu0
  %v231 = vsub.f32 0.0, %v228
  %v232 = vmul.f32 %v231, 1.442695
  %v233 = vpow.pop %v232
  %v234 = vadd.f32 %v233, 1.0
  %v235 = vrcp.pop %v234
  %v236 = vmul.f32 %v234, %v235
  %v237 = vsub.f32 1.0, %v236
  %v238 = vmul.f32 %v235, %v237
  %v239 = vadd.f32 %v235, %v238
  %vm240 = vweird.f32 %v234
  %vm241 = vweird.f32 %v235
  %vm242 = vmor %vm240, %vm241
  %v243 = vsel %vm242, %v235, %v239
  %v244 = vand.u32 2147483647, %v234
  %vm245 = vcmp.eq.f32.partialorder %v244, 8.507059e+37
  %v246 = vand.u32 %v234, 2147483648
  %v247 = vor.u32 1.1754944e-38, %v246
  %v248 = vsel %vm245, %v247, %v243
  %v249 = vmul.f32 %v228, %v248
  %v250 = vlaneseq
  %v251 = vand.u32 %v250, 127
  %vm252 = vcmp.lt.s32.totalorder %v251, 0
  %v253 = vsub.s32 0, %v251
  %v254 = vsel %vm252, %v253, %v251
  %v255 = vshrl.u32 %v254, 6
  %v256 = vand.u32 %v254, 63
  %v257 = vsub.s32 0, %v256
  %v258 = vsel %vm252, %v257, %v256
  %vm259 = vcmp.ne.s32.totalorder %v258, 0
  %vm260 = vcmp.lt.s32.totalorder %v258, 0
  %vm261 = vmand %vm260, %vm259
  %v262 = vadd.s32 %v258, 64
  %v263 = vsel %vm261, %v262, %v258
  %vm264 = vcmp.ge.s32.totalorder %v263, 8
  %vm265 = vcmp.lt.s32.totalorder %v251, 0
  %v266 = vsub.s32 0, %v251
  %v267 = vsel %vm265, %v266, %v251
  %v268 = vshrl.u32 %v267, 3
  %v269 = vand.u32 %v267, 7
  %v270 = vsub.s32 0, %v269
  %v271 = vsel %vm265, %v270, %v269
  %vm272 = vcmp.ne.s32.totalorder %v271, 0
  %vm273 = vcmp.lt.s32.totalorder %v271, 0
  %vm274 = vmand %vm273, %vm272
  %v275 = vadd.s32 %v271, 8
  %v276 = vsel %vm274, %v275, %v271
  %vm277 = vcmp.ne.s32.totalorder %v276, 0
  %vm278 = vmand %vm264, %vm277
  %v279 = vld [vmem:[#allocation2 + $0x18] sm:$0xff]
  %280 = vrot.lane.b32.xlu0 %v279, 9
  %v281 = vpop.permute.xlu0 %280
  %v282 = vsel %vm278, 1, 0
  %vm283 = vcmp.eq.s32.totalorder %v282, 1
  %v284 = vsel %vm283, %v281, 0.0
  %v285 = vld [vmem:[#allocation2 + $0x10] sm:$0xff]
  %286 = vrot.lane.b32.xlu0 %v285, 8
  %v287 = vpop.permute.xlu0 %286
  %v288 = vsel %vm264, 1, 0
  %vm289 = vcmp.eq.s32.totalorder %v288, 1
  %v290 = vsel %vm289, %v287, 0.0
  %291 = vrot.lane.b32.xlu0 %v279, 8
  %v292 = vpop.permute.xlu0 %291
  %v293 = vsel %vm289, %v292, 0.0
  %v294 = vld [vmem:[#allocation2 + $0x8] sm:$0xff]
  %295 = vrot.lane.b32.xlu0 %v294, 1
  %v296 = vpop.permute.xlu0 %295
  %v297 = vsel %vm277, 1, 0
  %vm298 = vcmp.eq.s32.totalorder %v297, 1
  %v299 = vsel %vm298, %v296, 0.0
  %v300 = vld [vmem:[#allocation2] sm:$0xff]
  %301 = vrot.lane.b32.xlu0 %v279, 1
  %v302 = vpop.permute.xlu0 %301
  %v303 = vsel %vm298, %v302, 0.0
  %v304 = vpack.c.bf16 %v290, %v284
  %v305 = vpack.c.bf16 %v299, %v293
  %v306 = vpack.c.bf16 %v294, %v300
  %v307 = vpack.c.bf16 %v285, %v303
  %v308 = vpack.c.bf16 %v279, %v279
  %v309 = vld [vmem:[%s3] sm:$0x1]
  %v310 = vld [vmem:[%s4] sm:$0x3]
  %312 = vset.pattern.permute.xlu0 0
  %313 = vperm.xlu0 %312, %v310
  %v314 = vpop.permute.xlu0 %313
  %vm316 = vcmask 588800
  %v318 = vsel %vm316, %v309, 0
  %vm320 = vcmask 1043456
  %v322 = vsel %vm320, %v308, 0
  %324 = vmatpush.bf16.msra.mxu0 0
  %325 = vmatpush.bf16.msra.mxu0 0
  %326 = vmatpush.bf16.msra.mxu0 0
  %327 = vmatpush.bf16.msra.mxu0 %v322
  %328 = vmatpush.bf16.msra.mxu0 %v307
  %329 = vmatpush.bf16.msra.mxu0 %v306
  %330 = vmatpush.bf16.msra.mxu0 %v305
  %331 = vmatpush.bf16.msra.mxu0 %v304
  %332 = vmatmul.bf16.gmra.mxu0 %v318
  %v333 = vpop.f32.mrf.mxu0
  %v334 = vadd.f32 %v314, %v333
  %v335 = vpop.f32.mrf.mxu0
  %336 = vdwg.mxu0
  %v337 = vsub.f32 0.0, %v334
  %v338 = vmul.f32 %v337, 1.442695
  %v339 = vpow.pop %v338
  %v340 = vadd.f32 %v339, 1.0
  %v341 = vrcp.pop %v340
  %v342 = vmul.f32 %v340, %v341
  %v343 = vsub.f32 1.0, %v342
  %v344 = vmul.f32 %v341, %v343
  %v345 = vadd.f32 %v341, %v344
  %vm346 = vweird.f32 %v340
  %vm347 = vweird.f32 %v341
  %vm348 = vmor %vm346, %vm347
  %v349 = vsel %vm348, %v341, %v345
  %v350 = vand.u32 2147483647, %v340
  %vm351 = vcmp.eq.f32.partialorder %v350, 8.507059e+37
  %v352 = vand.u32 %v340, 2147483648
  %v353 = vor.u32 1.1754944e-38, %v352
  %v354 = vsel %vm351, %v353, %v349
  %v355 = vmul.f32 %v334, %v354
  %356 = vst [vmem:[%s7] sm:$0x3] %v355
  %s357 = scalar_lea.vmem %s7, 2
  %358 = vst [vmem:[%s357] sm:$0x3] %v249
  // Predicated region
  $region30: #{downc_forward.1} parent=0 // pred_check
    _
  $region31: #{downc_forward.1} parent=0 // pred_check_branch
    %360 = sbr.rel (0) target = $region33
  $region32: #{downc_forward.1} parent=0 // pred_region
    _
  $region33: #{downc_forward.1} parent=0 // pred_fallthru
    _
  // Predicated region
  $region34: #{downc_forward.1} parent=0 // pred_check
    _
  $region35: #{downc_forward.1} parent=0 // pred_check_branch
    %362 = sbr.rel (0) target = $region37
  $region36: #{downc_forward.1} parent=0 // pred_region
    _
  $region37: #{downc_forward.1} parent=0 // pred_fallthru
    _

</llo_original>
